<compile_context>
chip_gen: v6e
topology: v6e:2x2x1
jax: 0.10.0
libtpu: 0.0.40
codegen_flags: <defaults>
</compile_context>

<pallas_src>
import functools

import jax
import jax.numpy as jnp
from jax import lax
from jax.experimental import pallas as pl
from jax.experimental.pallas import tpu as pltpu

_LANE = 128
_DEFAULT_CHUNK_B = 1024
_DEFAULT_BLOCK_CAP = 8192   # safe on v7x's 64 MiB VMEM; override upward on v5e/v6e


def _encoder_body(xv, w1, b1, w2, b2, out_dtype, compute_dtype):
    """relu(x @ w1 + b1) @ w2 + b2 for one (sub-)tile of rows."""
    if compute_dtype is not None and xv.dtype != compute_dtype:
        # Cast on the VMEM tile (VPU op); no extra HBM round-trip for x.
        xv = xv.astype(compute_dtype)
    h = jnp.dot(xv, w1, preferred_element_type=jnp.float32)          # MXU, f32 acc
    h = jnp.maximum(h + b1, 0.0)                                     # VPU, f32
    # Intentional downcast of activations to the weight dtype on the bf16 path;
    # accumulation stays f32.
    y = jnp.dot(h.astype(w2.dtype), w2, preferred_element_type=jnp.float32)
    return (y + b2).astype(out_dtype)


def encoder_kernel(x_ref, w1_ref, b1_ref, w2_ref, b2_ref, o_ref, *,
                   compute_dtype, chunk_b):
    w1 = w1_ref[...]
    b1 = b1_ref[...]
    w2 = w2_ref[...]
    b2 = b2_ref[...]
    block_b = x_ref.shape[0]

    if chunk_b is None or chunk_b >= block_b:
        o_ref[...] = _encoder_body(x_ref[...], w1, b1, w2, b2,
                                   o_ref.dtype, compute_dtype)
    else:
        # block_b % chunk_b == 0 is guaranteed by the wrapper.
        n_chunks = block_b // chunk_b

        def loop_body(c, carry):
            r = pl.multiple_of(c * chunk_b, chunk_b)
            xv = x_ref[pl.ds(r, chunk_b), :]
            o_ref[pl.ds(r, chunk_b), :] = _encoder_body(
                xv, w1, b1, w2, b2, o_ref.dtype, compute_dtype)
            return carry

        lax.fori_loop(0, n_chunks, loop_body, 0, unroll=False)


def _default_block_b(B, cap=_DEFAULT_BLOCK_CAP):
    """Batch tile: whole batch only when tiny; otherwise a 512-aligned tile
    that guarantees >= 4 grid steps (pipelining + v7x megacore sharding)."""
    if B <= 1024:
        return B
    return max(512, min(cap, (pl.cdiv(B, 4) // 512) * 512))


def _pad_lanes(d):
    return ((d + _LANE - 1) // _LANE) * _LANE


def _vmem_bytes_estimate(block_b, in_dim, hidden, latent,
                         x_itemsize, w_itemsize, out_itemsize, chunk_b):
    """Rough lane-padded VMEM footprint (double-buffered I/O + temps)."""
    x_buf = 2 * block_b * _pad_lanes(in_dim) * x_itemsize
    y_buf = 2 * block_b * _pad_lanes(latent) * out_itemsize
    weights = (in_dim * _pad_lanes(hidden) + hidden * _pad_lanes(latent)) * w_itemsize
    biases = (_pad_lanes(hidden) + _pad_lanes(latent)) * 4
    t = chunk_b if (chunk_b is not None and chunk_b < block_b) else block_b
    temps = t * _pad_lanes(hidden) * (4 + w_itemsize)   # f32 h + cast copy
    return x_buf + y_buf + weights + biases + temps


def encoder_forward(x, w1, b1, w2, b2, *, block_b=None, chunk_b=None,
                    compute_dtype=None, out_dtype=None):
    """Fused MLP encoder: relu(x @ w1 + b1) @ w2 + b2.

    compute_dtype: optional low-precision dtype (e.g. jnp.bfloat16) for the
      matmul operands.  Only w1/w2 are cast in the wrapper (tiny, resident);
      the x tile is cast inside the kernel.  Both dots accumulate in f32.
    out_dtype: dtype of the returned array (default: x.dtype).  bf16 halves
      the narrow-output store payload on bandwidth-bound paths.
    """
    B, in_dim = x.shape
    hidden = w1.shape[1]
    latent = w2.shape[1]
    if out_dtype is None:
        out_dtype = x.dtype   # note: bf16 x with compute_dtype=None => bf16 out

    if compute_dtype is not None:
        w1 = w1.astype(compute_dtype)
        w2 = w2.astype(compute_dtype)
    # Biases stay f32: added to the f32 accumulator inside the kernel.
    b1 = b1.astype(jnp.float32)
    b2 = b2.astype(jnp.float32)

    if block_b is None:
        block_b = _default_block_b(B)
    block_b = min(block_b, B)

    # In-kernel chunking only when the tile cleanly divides into sub-tiles.
    if chunk_b is None:
        chunk_b = (_DEFAULT_CHUNK_B
                   if (block_b > _DEFAULT_CHUNK_B and block_b % _DEFAULT_CHUNK_B == 0)
                   else None)
    elif chunk_b >= block_b or block_b % chunk_b != 0:
        chunk_b = None

    grid = (pl.cdiv(B, block_b),)

    # Raise the scoped VMEM limit only when the tile needs it (v5e/v6e large
    # tiles); cap at 64 MiB so we never exceed v7x physical VMEM.
    est = _vmem_bytes_estimate(block_b, in_dim, hidden, latent,
                               x.dtype.itemsize, w1.dtype.itemsize,
                               jnp.dtype(out_dtype).itemsize, chunk_b)
    budget = int(est * 1.5) + (2 << 20)
    vmem_limit = min(budget, 64 << 20) if budget > (30 << 20) else None

    kernel = functools.partial(encoder_kernel,
                               compute_dtype=compute_dtype, chunk_b=chunk_b)

    return pl.pallas_call(
        kernel,
        out_shape=jax.ShapeDtypeStruct((B, latent), out_dtype),
        grid_spec=pltpu.PrefetchScalarGridSpec(
            num_scalar_prefetch=0,
            grid=grid,
            in_specs=[
                pl.BlockSpec((block_b, in_dim), lambda i: (i, 0)),  # x tile (pipelined)
                pl.BlockSpec((in_dim, hidden), lambda i: (0, 0)),   # W1 (resident)
                pl.BlockSpec((1, hidden), lambda i: (0, 0)),        # b1 (resident, f32)
                pl.BlockSpec((hidden, latent), lambda i: (0, 0)),   # W2 (resident)
                pl.BlockSpec((1, latent), lambda i: (0, 0)),        # b2 (resident, f32)
            ],
            out_specs=pl.BlockSpec((block_b, latent), lambda i: (i, 0)),
        ),
        compiler_params=pltpu.CompilerParams(
            dimension_semantics=("parallel",),
            vmem_limit_bytes=vmem_limit),
    )(x, w1, b1, w2, b2)


def init_params(key, input_dim, latent_dim, hidden_dim=128, dtype=jnp.float32):
    """Deterministic synthetic parameters (shapes match the nn.Linear layers)."""
    k1, k2, k3, k4 = jax.random.split(key, 4)
    # Stored as [in, out]; scale roughly like PyTorch's default init.
    w1 = jax.random.uniform(k1, (input_dim, hidden_dim), dtype,
                            minval=-1.0, maxval=1.0) / jnp.sqrt(input_dim)
    b1 = jax.random.uniform(k2, (1, hidden_dim), dtype,
                            minval=-1.0, maxval=1.0) / jnp.sqrt(input_dim)
    w2 = jax.random.uniform(k3, (hidden_dim, latent_dim), dtype,
                            minval=-1.0, maxval=1.0) / jnp.sqrt(hidden_dim)
    b2 = jax.random.uniform(k4, (1, latent_dim), dtype,
                            minval=-1.0, maxval=1.0) / jnp.sqrt(hidden_dim)
    return w1, b1, w2, b2


if __name__ == "__main__":
    key = jax.random.PRNGKey(0)
    kx, kp, kx2 = jax.random.split(key, 3)

    batch = 8
    input_dim = 32
    hidden_dim = 128
    latent_dim = 16

    x = jax.random.normal(kx, (batch, input_dim), jnp.float32)
    w1, b1, w2, b2 = init_params(kp, input_dim, latent_dim, hidden_dim)

    # Plain-JAX reference (same math as the PyTorch module).
    ref = jnp.maximum(x @ w1 + b1, 0.0) @ w2 + b2

    # 1) f32 path, tiny batch -> single full-batch tile.
    out = jax.block_until_ready(encoder_forward(x, w1, b1, w2, b2))
    assert out.shape == (batch, latent_dim) and out.dtype == jnp.float32
    assert jnp.allclose(out, ref, atol=1e-5, rtol=1e-5)

    # 2) bf16 compute path (weights cast in wrapper, x cast in-kernel,
    #    f32 accumulation, f32 output).
    out_bf16 = jax.block_until_ready(
        encoder_forward(x, w1, b1, w2, b2, compute_dtype=jnp.bfloat16))
    assert out_bf16.dtype == jnp.float32
    assert jnp.allclose(out_bf16, ref, atol=5e-2, rtol=5e-2)

    # 3) Multi-step default tiling with a partial edge block:
    #    B=2304 -> block_b=512, grid=(5,), exercises pipelining + masked
    #    edge writeback.
    B2 = 2304
    xb = jax.random.normal(kx2, (B2, input_dim), jnp.float32)
    refb = jnp.maximum(xb @ w1 + b1, 0.0) @ w2 + b2
    outb = jax.block_until_ready(encoder_forward(xb, w1, b1, w2, b2))
    assert outb.shape == (B2, latent_dim)
    assert jnp.allclose(outb, refb, atol=1e-5, rtol=1e-5)

    # 4) Explicit tile + in-kernel chunking + bf16 output writeback.
    outc = jax.block_until_ready(
        encoder_forward(xb, w1, b1, w2, b2, block_b=1024, chunk_b=512,
                        out_dtype=jnp.bfloat16))
    assert outc.shape == (B2, latent_dim) and outc.dtype == jnp.bfloat16
    assert jnp.allclose(outc.astype(jnp.float32), refb, atol=5e-2, rtol=5e-2)

    print("KERNEL_OK")
</pallas_src>

<mosaic_0001>
module attributes {stable_mosaic.version = 11 : i64} {
  func.func @encoder_kernel(%arg0: i32, %arg1: memref<8x32xf32, #tpu.memory_space<vmem>>, %arg2: memref<32x128xf32, #tpu.memory_space<vmem>>, %arg3: memref<1x128xf32, #tpu.memory_space<vmem>>, %arg4: memref<128x16xf32, #tpu.memory_space<vmem>>, %arg5: memref<1x16xf32, #tpu.memory_space<vmem>>, %arg6: memref<8x16xf32, #tpu.memory_space<vmem>>) attributes {dimension_semantics = [#tpu.dimension_semantics<parallel>], iteration_bounds = array<i64: 1>, scalar_prefetch = 0 : i64, scratch_operands = 0 : i64, tpu.core_type = #tpu.core_type<tc>, window_params = [{transform_indices = @transform_0, window_bounds = array<i64: 8, 32>}, {pipeline_mode = #tpu.pipeline_mode<synchronous>, transform_indices = @transform_1, window_bounds = array<i64: 32, 128>}, {pipeline_mode = #tpu.pipeline_mode<synchronous>, transform_indices = @transform_2, window_bounds = array<i64: 1, 128>}, {pipeline_mode = #tpu.pipeline_mode<synchronous>, transform_indices = @transform_3, window_bounds = array<i64: 128, 16>}, {pipeline_mode = #tpu.pipeline_mode<synchronous>, transform_indices = @transform_4, window_bounds = array<i64: 1, 16>}, {transform_indices = @transform_5, window_bounds = array<i64: 8, 16>}]} {
    %c0 = arith.constant 0 : index
    %c0_0 = arith.constant 0 : index
    %0 = vector.load %arg2[%c0, %c0_0] : memref<32x128xf32, #tpu.memory_space<vmem>>, vector<32x128xf32>
    %c0_1 = arith.constant 0 : index
    %c0_2 = arith.constant 0 : index
    %1 = vector.load %arg3[%c0_1, %c0_2] : memref<1x128xf32, #tpu.memory_space<vmem>>, vector<1x128xf32>
    %c0_3 = arith.constant 0 : index
    %c0_4 = arith.constant 0 : index
    %2 = vector.load %arg4[%c0_3, %c0_4] : memref<128x16xf32, #tpu.memory_space<vmem>>, vector<128x16xf32>
    %c0_5 = arith.constant 0 : index
    %c0_6 = arith.constant 0 : index
    %3 = vector.load %arg5[%c0_5, %c0_6] : memref<1x16xf32, #tpu.memory_space<vmem>>, vector<1x16xf32>
    %c0_7 = arith.constant 0 : index
    %c0_8 = arith.constant 0 : index
    %4 = vector.load %arg1[%c0_7, %c0_8] : memref<8x32xf32, #tpu.memory_space<vmem>>, vector<8x32xf32>
    %cst = arith.constant dense<0.000000e+00> : vector<8x128xf32>
    %5 = tpu.matmul %4, %0, %cst {dimension_numbers = #tpu.dot_dimension_numbers<[1], [0], [0], [1], [0, 0, 1, 1], [], []>} : vector<8x32xf32>, vector<32x128xf32>, vector<8x128xf32> -> vector<8x128xf32>
    %6 = vector.broadcast %1 : vector<1x128xf32> to vector<8x128xf32>
    %7 = arith.addf %5, %6 : vector<8x128xf32>
    %cst_9 = arith.constant 0.000000e+00 : f32
    %8 = vector.broadcast %cst_9 : f32 to vector<8x128xf32>
    %9 = arith.maximumf %7, %8 : vector<8x128xf32>
    %cst_10 = arith.constant dense<0.000000e+00> : vector<8x16xf32>
    %10 = tpu.matmul %9, %2, %cst_10 {dimension_numbers = #tpu.dot_dimension_numbers<[1], [0], [0], [1], [0, 0, 1, 1], [], []>} : vector<8x128xf32>, vector<128x16xf32>, vector<8x16xf32> -> vector<8x16xf32>
    %11 = vector.broadcast %3 : vector<1x16xf32> to vector<8x16xf32>
    %12 = arith.addf %10, %11 : vector<8x16xf32>
    %c0_11 = arith.constant 0 : index
    %c0_12 = arith.constant 0 : index
    %13 = vector.load %arg6[%c0_11, %c0_12] : memref<8x16xf32, #tpu.memory_space<vmem>>, vector<8x16xf32>
    tpu.vector_store %arg6[%c0_11, %c0_12], %12 {strides = array<i32>} : memref<8x16xf32, #tpu.memory_space<vmem>>, vector<8x16xf32>,
    return
  }
  func.func @transform_0(%arg0: i32) -> (i32, i32) {
    %c0_i32 = arith.constant 0 : i32
    %c0_i32_0 = arith.constant 0 : i32
    return %arg0, %c0_i32 : i32, i32
  }
  func.func @transform_1(%arg0: i32) -> (i32, i32) {
    %c0_i32 = arith.constant 0 : i32
    %c0_i32_0 = arith.constant 0 : i32
    %c0_i32_1 = arith.constant 0 : i32
    return %c0_i32, %c0_i32_0 : i32, i32
  }
  func.func @transform_2(%arg0: i32) -> (i32, i32) {
    %c0_i32 = arith.constant 0 : i32
    %c0_i32_0 = arith.constant 0 : i32
    %c0_i32_1 = arith.constant 0 : i32
    return %c0_i32, %c0_i32_0 : i32, i32
  }
  func.func @transform_3(%arg0: i32) -> (i32, i32) {
    %c0_i32 = arith.constant 0 : i32
    %c0_i32_0 = arith.constant 0 : i32
    %c0_i32_1 = arith.constant 0 : i32
    return %c0_i32, %c0_i32_0 : i32, i32
  }
  func.func @transform_4(%arg0: i32) -> (i32, i32) {
    %c0_i32 = arith.constant 0 : i32
    %c0_i32_0 = arith.constant 0 : i32
    %c0_i32_1 = arith.constant 0 : i32
    return %c0_i32, %c0_i32_0 : i32, i32
  }
  func.func @transform_5(%arg0: i32) -> (i32, i32) {
    %c0_i32 = arith.constant 0 : i32
    %c0_i32_0 = arith.constant 0 : i32
    return %arg0, %c0_i32 : i32, i32
  }
}

</mosaic_0001>

<llo_original>
// kernel: tpu_custom_call.1
$region0: #{tpu_custom_call.1}
  #allocation0 [shape = 'u32[]', space=smem, size = 0x4, offset = 0x4, fixed_abs, tag = 'smem constant byte address 0x4 - core index']
  #allocation1 [shape = 'u32[144,128]{1,0:T(1,128)}', space=vmem, size = 0x12000, scoped, tag = 'internal scratch']
  %s0 = inlined_call_operand.vmem [shape: f32[8,32], index: 0, kind: input, shape index: {}]
  %s1 = inlined_call_operand.vmem [shape: f32[32,128], index: 1, kind: input, shape index: {}]
  %s2 = inlined_call_operand.vmem [shape: f32[1,128], index: 2, kind: input, shape index: {}]
  %s3 = inlined_call_operand.vmem [shape: f32[128,16], index: 3, kind: input, shape index: {}]
  %s4 = inlined_call_operand.vmem [shape: f32[1,16], index: 4, kind: input, shape index: {}]
  %s5 = inlined_call_operand.hbm [shape: f32[8,16], index: 5, kind: output, shape index: {}]
  %s6 = sld [smem:[#allocation0]]
  $region30: #{tpu_custom_call.1} parent=0
    _
  %s8 = ssub.s32 1, %s6
  %s9 = scalar_select 0, %s8, %s6
  $region1: #{tpu_custom_call.1} parent=0
    #allocation2 [shape = 'u8[4096]{0}', space=vmem, size = 0x1000, scoped, tag = 'output window, operand 0, single buffered']
    #allocation3 [shape = 's32[1]{0}', space=sflag, size = 0x4, scoped, tag = 'scoped memory for tpu_custom_call.1']
    %10 = vsyncpa [#allocation3], 0
    // Predicated region
    $region2: #{tpu_custom_call.1} parent=1 // pred_check
      _
    $region3: #{tpu_custom_call.1} parent=1 // pred_check_branch
      %12 = sbr.rel (0) target = $region5
    $region4: #{tpu_custom_call.1} parent=1 // pred_region
      _
    $region5: #{tpu_custom_call.1} parent=1 // pred_fallthru
      _
    // Predicated region
    $region6: #{tpu_custom_call.1} parent=1 // pred_check
      _
    $region7: #{tpu_custom_call.1} parent=1 // pred_check_branch
      %14 = sbr.rel (0) target = $region9
    $region8: #{tpu_custom_call.1} parent=1 // pred_region
      _
    $region9: #{tpu_custom_call.1} parent=1 // pred_fallthru
      _
    // Predicated region
    $region10: #{tpu_custom_call.1} parent=1 // pred_check
      _
    $region11: #{tpu_custom_call.1} parent=1 // pred_check_branch
      %16 = sbr.rel (0) target = $region13
    $region12: #{tpu_custom_call.1} parent=1 // pred_region
      _
    $region13: #{tpu_custom_call.1} parent=1 // pred_fallthru
      _
    // Predicated region
    $region14: #{tpu_custom_call.1} parent=1 // pred_check
      _
    $region15: #{tpu_custom_call.1} parent=1 // pred_check_branch
      %18 = sbr.rel (0) target = $region17
    $region16: #{tpu_custom_call.1} parent=1 // pred_region
      _
    $region17: #{tpu_custom_call.1} parent=1 // pred_fallthru
      _
    // Predicated region
    $region18: #{tpu_custom_call.1} parent=1 // pred_check
      _
    $region19: #{tpu_custom_call.1} parent=1 // pred_check_branch
      %20 = sbr.rel (0) target = $region21
    $region20: #{tpu_custom_call.1} parent=1 // pred_region
      _
    $region21: #{tpu_custom_call.1} parent=1 // pred_fallthru
      _
    %v21 = vld [vmem:[%s1] sm:$0xff]
    %v22 = vld [vmem:[%s1 + $0x8] sm:$0xff]
    %v23 = vld [vmem:[%s1 + $0x10] sm:$0xff]
    %v24 = vld [vmem:[%s1 + $0x18] sm:$0xff]
    %v25 = vld [vmem:[%s2] sm:$0x1]
    %v26 = vld [vmem:[%s3] sm:$0xff]
    %v27 = vld [vmem:[%s3 + $0x8] sm:$0xff]
    %v28 = vld [vmem:[%s3 + $0x10] sm:$0xff]
    %v29 = vld [vmem:[%s3 + $0x18] sm:$0xff]
    %v30 = vld [vmem:[%s3 + $0x20] sm:$0xff]
    %v31 = vld [vmem:[%s3 + $0x28] sm:$0xff]
    %v32 = vld [vmem:[%s3 + $0x30] sm:$0xff]
    %v33 = vld [vmem:[%s3 + $0x38] sm:$0xff]
    %v34 = vld [vmem:[%s3 + $0x40] sm:$0xff]
    %v35 = vld [vmem:[%s3 + $0x48] sm:$0xff]
    %v36 = vld [vmem:[%s3 + $0x50] sm:$0xff]
    %v37 = vld [vmem:[%s3 + $0x58] sm:$0xff]
    %v38 = vld [vmem:[%s3 + $0x60] sm:$0xff]
    %v39 = vld [vmem:[%s3 + $0x68] sm:$0xff]
    %v40 = vld [vmem:[%s3 + $0x70] sm:$0xff]
    %v41 = vld [vmem:[%s3 + $0x78] sm:$0xff]
    %v42 = vld [vmem:[%s4] sm:$0x1]
    %v43 = vld [vmem:[%s0] sm:$0xff]
    %v45 = vlaneseq
    %v46 = vshrl.u32 %v45, 7
    %v47 = vsub.s32 0, %v46
    %v48 = vrot.slane %v25, %v47
    %vm50 = vcmask 261120
    %v52 = vsel %vm50, %v43, 0
    %54 = vmatprep.subr.mxu0 0.0
    %55 = vmatpush1.msra.mxu0 0.0
    %56 = vmatprep.subr.mxu0 0.0
    %57 = vmatpush1.msra.mxu0 0.0
    %58 = vmatprep.subr.mxu0 0.0
    %59 = vmatpush1.msra.mxu0 0.0
    %60 = vmatprep.subr.mxu0 0.0
    %61 = vmatpush1.msra.mxu0 0.0
    %62 = vmatprep.subr.mxu0 0.0
    %63 = vmatpush1.msra.mxu0 0.0
    %64 = vmatprep.subr.mxu0 0.0
    %65 = vmatpush1.msra.mxu0 0.0
    %66 = vmatprep.subr.mxu0 0.0
    %67 = vmatpush1.msra.mxu0 0.0
    %68 = vmatprep.subr.mxu0 0.0
    %69 = vmatpush1.msra.mxu0 0.0
    %70 = vmatprep.subr.mxu0 0.0
    %71 = vmatpush1.msra.mxu0 0.0
    %72 = vmatprep.subr.mxu0 0.0
    %73 = vmatpush1.msra.mxu0 0.0
    %74 = vmatprep.subr.mxu0 0.0
    %75 = vmatpush1.msra.mxu0 0.0
    %76 = vmatprep.subr.mxu0 0.0
    %77 = vmatpush1.msra.mxu0 0.0
    %78 = vmatprep.subr.mxu0 0.0
    %79 = vmatpush1.msra.mxu0 %v24
    %80 = vmatprep.subr.mxu0 0.0
    %81 = vmatpush1.msra.mxu0 %v23
    %82 = vmatprep.subr.mxu0 0.0
    %83 = vmatpush1.msra.mxu0 %v22
    %84 = vmatprep.subr.mxu0 0.0
    %85 = vmatpush1.msra.mxu0 %v21
    %86 = vmatprep.subr.mxu0 0.0
    %87 = vmatpush2.msra.mxu0 0.0
    %88 = vmatprep.subr.mxu0 0.0
    %89 = vmatpush2.msra.mxu0 0.0
    %90 = vmatprep.subr.mxu0 0.0
    %91 = vmatpush2.msra.mxu0 0.0
    %92 = vmatprep.subr.mxu0 0.0
    %93 = vmatpush2.msra.mxu0 0.0
    %94 = vmatprep.subr.mxu0 0.0
    %95 = vmatpush2.msra.mxu0 0.0
    %96 = vmatprep.subr.mxu0 0.0
    %97 = vmatpush2.msra.mxu0 0.0
    %98 = vmatprep.subr.mxu0 0.0
    %99 = vmatpush2.msra.mxu0 0.0
    %100 = vmatprep.subr.mxu0 0.0
    %101 = vmatpush2.msra.mxu0 0.0
    %102 = vmatprep.subr.mxu0 0.0
    %103 = vmatpush2.msra.mxu0 0.0
    %104 = vmatprep.subr.mxu0 0.0
    %105 = vmatpush2.msra.mxu0 0.0
    %106 = vmatprep.subr.mxu0 0.0
    %107 = vmatpush2.msra.mxu0 0.0
    %108 = vmatprep.subr.mxu0 0.0
    %109 = vmatpush2.msra.mxu0 0.0
    %110 = vmatprep.subr.mxu0 0.0
    %111 = vmatpush2.msra.mxu0 0.0
    %112 = vmatprep.subr.mxu0 0.0
    %113 = vmatpush2.msra.mxu0 0.0
    %114 = vmatprep.subr.mxu0 0.0
    %115 = vmatpush2.msra.mxu0 0.0
    %116 = vmatprep.subr.mxu0 0.0
    %117 = vmatpush2.msra.mxu0 0.0
    %118 = vmatprep.mubr.f32.mxu0 0.0
    %119 = vmatmul.mubr.f32.gmra.mxu0 %v52
    %v120 = vpop.f32.mrf.mxu0
    %v121 = vadd.f32 %v48, %v120
    %v122 = vpop.f32.mrf.mxu0
    %123 = vdwg.mxu0
    %v124 = vmax.f32 %v121, 0.0
    %v126 = vlaneseq
    %v127 = vshrl.u32 %v126, 7
    %v128 = vsub.s32 0, %v127
    %v129 = vrot.slane %v42, %v128
    %131 = vmatprep.subr.mxu0 0.0
    %132 = vmatpush1.msra.mxu0 %v41
    %133 = vmatprep.subr.mxu0 0.0
    %134 = vmatpush1.msra.mxu0 %v40
    %135 = vmatprep.subr.mxu0 0.0
    %136 = vmatpush1.msra.mxu0 %v39
    %137 = vmatprep.subr.mxu0 0.0
    %138 = vmatpush1.msra.mxu0 %v38
    %139 = vmatprep.subr.mxu0 0.0
    %140 = vmatpush1.msra.mxu0 %v37
    %141 = vmatprep.subr.mxu0 0.0
    %142 = vmatpush1.msra.mxu0 %v36
    %143 = vmatprep.subr.mxu0 0.0
    %144 = vmatpush1.msra.mxu0 %v35
    %145 = vmatprep.subr.mxu0 0.0
    %146 = vmatpush1.msra.mxu0 %v34
    %147 = vmatprep.subr.mxu0 0.0
    %148 = vmatpush1.msra.mxu0 %v33
    %149 = vmatprep.subr.mxu0 0.0
    %150 = vmatpush1.msra.mxu0 %v32
    %151 = vmatprep.subr.mxu0 0.0
    %152 = vmatpush1.msra.mxu0 %v31
    %153 = vmatprep.subr.mxu0 0.0
    %154 = vmatpush1.msra.mxu0 %v30
    %155 = vmatprep.subr.mxu0 0.0
    %156 = vmatpush1.msra.mxu0 %v29
    %157 = vmatprep.subr.mxu0 0.0
    %158 = vmatpush1.msra.mxu0 %v28
    %159 = vmatprep.subr.mxu0 0.0
    %160 = vmatpush1.msra.mxu0 %v27
    %161 = vmatprep.subr.mxu0 0.0
    %162 = vmatpush1.msra.mxu0 %v26
    %163 = vmatprep.subr.mxu0 0.0
    %164 = vmatpush2.msra.mxu0 0.0
    %165 = vmatprep.subr.mxu0 0.0
    %166 = vmatpush2.msra.mxu0 0.0
    %167 = vmatprep.subr.mxu0 0.0
    %168 = vmatpush2.msra.mxu0 0.0
    %169 = vmatprep.subr.mxu0 0.0
    %170 = vmatpush2.msra.mxu0 0.0
    %171 = vmatprep.subr.mxu0 0.0
    %172 = vmatpush2.msra.mxu0 0.0
    %173 = vmatprep.subr.mxu0 0.0
    %174 = vmatpush2.msra.mxu0 0.0
    %175 = vmatprep.subr.mxu0 0.0
    %176 = vmatpush2.msra.mxu0 0.0
    %177 = vmatprep.subr.mxu0 0.0
    %178 = vmatpush2.msra.mxu0 0.0
    %179 = vmatprep.subr.mxu0 0.0
    %180 = vmatpush2.msra.mxu0 0.0
    %181 = vmatprep.subr.mxu0 0.0
    %182 = vmatpush2.msra.mxu0 0.0
    %183 = vmatprep.subr.mxu0 0.0
    %184 = vmatpush2.msra.mxu0 0.0
    %185 = vmatprep.subr.mxu0 0.0
    %186 = vmatpush2.msra.mxu0 0.0
    %187 = vmatprep.subr.mxu0 0.0
    %188 = vmatpush2.msra.mxu0 0.0
    %189 = vmatprep.subr.mxu0 0.0
    %190 = vmatpush2.msra.mxu0 0.0
    %191 = vmatprep.subr.mxu0 0.0
    %192 = vmatpush2.msra.mxu0 0.0
    %193 = vmatprep.subr.mxu0 0.0
    %194 = vmatpush2.msra.mxu0 0.0
    %195 = vmatprep.mubr.f32.mxu0 0.0
    %196 = vmatmul.mubr.f32.gmra.mxu0 %v124
    %v197 = vpop.f32.mrf.mxu0
    %v198 = vadd.f32 %v129, %v197
    %v199 = vpop.f32.mrf.mxu0
    %200 = vdwg.mxu0
    %vm201 = vcmask 130048
    %202 = vst.msk [vmem:[#allocation2] sm:$0xff] %vm201, %v198
    // Predicated region
    $region22: #{tpu_custom_call.1} parent=1 // pred_check
      _
    $region23: #{tpu_custom_call.1} parent=1 // pred_check_branch
      %204 = sbr.rel (0) target = $region25
    $region24: #{tpu_custom_call.1} parent=1 // pred_region
      %s206 = ssub.s32 128, 128
      %207 = vsyncadd [#allocation3], %s206
      %s209 = sshll.u32 [#allocation2], 4
      %s210 = int_to_ptr.vmem [resolvable:$true] %s209
      %212 = dma.vmem_to_hbm [thread:$0]  %s210, 128, %s5, [#allocation3]
    $region25: #{tpu_custom_call.1} parent=1 // pred_fallthru
      _
    // Predicated region
    $region26: #{tpu_custom_call.1} parent=1 // pred_check
      _
    $region27: #{tpu_custom_call.1} parent=1 // pred_check_branch
      %214 = sbr.rel (0) target = $region29
    $region28: #{tpu_custom_call.1} parent=1 // pred_region
      %215 = dma.done [#allocation3], 128
    $region29: #{tpu_custom_call.1} parent=1 // pred_fallthru
      _
    %216 = vsyncpa [#allocation3], 1

</llo_original>
